<compile_context>
chip_gen: v7x
topology: tpu7x:2x2x1
jax: 0.10.0
libtpu: 0.0.40
codegen_flags: <defaults>
</compile_context>

<pallas_src>
import functools

import jax
import jax.numpy as jnp
from jax import lax
from jax.experimental import pallas as pl
from jax.experimental.pallas import tpu as pltpu

CLIPRANGE = 5.0
LN_EPS = 1e-5
_LANES = 128


def _round_up(a, b):
    return (a + b - 1) // b * b


def _body(x_ref, mean_ref, invstd_ref, w_ref, b_ref, gamma_ref, beta_ref,
          o_ref, *, red):
    # x_ref:    (tm_p, pack*d_in)       -- `pack` logical rows per packed row
    # mean/invstd: (1, pack*d_in)
    # w_ref:    (pack*d_in, pack*d_model) block-diagonal
    # b/gamma/beta: (1, pack*d_model)
    # red:      (pack*d_model, pack*d_model) block-diag(ones(d,d)/d) or None
    x = x_ref[...].astype(jnp.float32)

    # --- InputNorm: (x - mean) / std, clamp ---
    xn = jnp.clip((x - mean_ref[...]) * invstd_ref[...], -CLIPRANGE, CLIPRANGE)

    # --- Linear + ReLU (MXU) ---
    y = jnp.dot(xn, w_ref[...], preferred_element_type=jnp.float32) + b_ref[...]
    y = jnp.maximum(y, 0.0)

    # --- LayerNorm per logical row (per d_model-lane segment) ---
    if red is not None:
        # Segment mean / mean-of-squares broadcast via MXU (no lane slicing).
        mu = jnp.dot(y, red, preferred_element_type=jnp.float32)
        ms = jnp.dot(y * y, red, preferred_element_type=jnp.float32)
    else:
        inv_d = jnp.float32(1.0 / y.shape[-1])
        mu = jnp.sum(y, axis=-1, keepdims=True) * inv_d
        ms = jnp.sum(y * y, axis=-1, keepdims=True) * inv_d
    var = ms - mu * mu
    yn = (y - mu) * lax.rsqrt(var + LN_EPS)
    o_ref[...] = (yn * gamma_ref[...] + beta_ref[...]).astype(o_ref.dtype)


def _make_kernel(pack):
    if pack > 1:
        def kernel(x_ref, mean_ref, invstd_ref, w_ref, b_ref,
                   gamma_ref, beta_ref, red_ref, o_ref):
            _body(x_ref, mean_ref, invstd_ref, w_ref, b_ref,
                  gamma_ref, beta_ref, o_ref, red=red_ref[...])
    else:
        def kernel(x_ref, mean_ref, invstd_ref, w_ref, b_ref,
                   gamma_ref, beta_ref, o_ref):
            _body(x_ref, mean_ref, invstd_ref, w_ref, b_ref,
                  gamma_ref, beta_ref, o_ref, red=None)
    return kernel


@functools.partial(jax.jit, static_argnames=("tm", "out_dtype"))
def input_embedding(x, mean, invstd, w, b, gamma, beta, *, tm=2048,
                    out_dtype=jnp.float32):
    """x: [B, S, d_in] -> [B, S, d_model]."""
    B, S, d_in = x.shape
    d_in_w, d_model = w.shape
    assert d_in_w == d_in
    N = B * S

    # Pack `pack` logical rows into one 128-lane row so the output store is
    # lane-dense (d_model < 128 would otherwise force masked vst.msk stores).
    pack = _LANES // d_model if (d_model < _LANES and _LANES % d_model == 0) else 1

    # Logical-row tile: multiple of 8*pack (f32 sublane x packing), capped by
    # the (rounded-up) problem size.  N is padded to a multiple of the tile so
    # no tail rows are dropped; padded (zero) rows are computed and sliced off.
    row_align = 8 * pack
    tm_eff = min(_round_up(tm, row_align), _round_up(N, row_align))
    n_pad = _round_up(N, tm_eff)
    grid = n_pad // tm_eff
    tm_p = tm_eff // pack           # packed rows per tile

    x2 = x.reshape(N, d_in).astype(jnp.float32)
    if n_pad != N:
        x2 = jnp.pad(x2, ((0, n_pad - N), (0, 0)))
    xp = x2.reshape(n_pad // pack, pack * d_in)      # free row-major view

    # Packed / block-diagonal parameters (tiny, built per call under jit).
    eye = jnp.eye(pack, dtype=jnp.float32)
    mean_p = jnp.tile(mean.reshape(1, d_in).astype(jnp.float32), (1, pack))
    invstd_p = jnp.tile(invstd.reshape(1, d_in).astype(jnp.float32), (1, pack))
    w_p = jnp.kron(eye, w.astype(jnp.float32))       # (pack*d_in, pack*d_model)
    b_p = jnp.tile(b.reshape(1, d_model).astype(jnp.float32), (1, pack))
    gamma_p = jnp.tile(gamma.reshape(1, d_model).astype(jnp.float32), (1, pack))
    beta_p = jnp.tile(beta.reshape(1, d_model).astype(jnp.float32), (1, pack))

    operands = [xp, mean_p, invstd_p, w_p, b_p, gamma_p, beta_p]
    in_specs = [
        pl.BlockSpec((tm_p, pack * d_in), lambda i: (i, 0)),       # x rows
        pl.BlockSpec((1, pack * d_in), lambda i: (0, 0)),          # mean
        pl.BlockSpec((1, pack * d_in), lambda i: (0, 0)),          # 1/stddev
        pl.BlockSpec((pack * d_in, pack * d_model), lambda i: (0, 0)),  # W
        pl.BlockSpec((1, pack * d_model), lambda i: (0, 0)),       # bias
        pl.BlockSpec((1, pack * d_model), lambda i: (0, 0)),       # LN gamma
        pl.BlockSpec((1, pack * d_model), lambda i: (0, 0)),       # LN beta
    ]
    if pack > 1:
        # Block-diagonal segment-mean matrix: y @ red broadcasts each logical
        # row's mean across its own d_model-lane segment (rides the MXU).
        red = jnp.kron(eye, jnp.full((d_model, d_model), 1.0 / d_model,
                                     dtype=jnp.float32))
        operands.append(red)
        in_specs.append(
            pl.BlockSpec((pack * d_model, pack * d_model), lambda i: (0, 0)))

    # VMEM per step at tm=2048: ~2 MiB double-buffered -- well under the
    # scoped default; raise vmem_limit_bytes only if tm is pushed >> 8192.
    out = pl.pallas_call(
        _make_kernel(pack),
        out_shape=jax.ShapeDtypeStruct((n_pad // pack, pack * d_model),
                                       out_dtype),
        grid_spec=pltpu.PrefetchScalarGridSpec(
            num_scalar_prefetch=0,
            grid=(grid,),
            in_specs=in_specs,
            out_specs=pl.BlockSpec((tm_p, pack * d_model), lambda i: (i, 0)),
        ),
        compiler_params=pltpu.CompilerParams(
            dimension_semantics=("parallel",)),
    )(*operands)

    out = out.reshape(n_pad, d_model)[:N]
    return out.reshape(B, S, d_model)


def _reference(x2, mean, invstd, w, b, gamma, beta):
    xn = jnp.clip((x2 - mean.reshape(1, -1)) * invstd.reshape(1, -1),
                  -CLIPRANGE, CLIPRANGE)
    y = jnp.maximum(xn @ w + b.reshape(1, -1), 0.0)
    mu = jnp.mean(y, axis=-1, keepdims=True)
    var = jnp.mean((y - mu) ** 2, axis=-1, keepdims=True)
    return (((y - mu) / jnp.sqrt(var + LN_EPS)) * gamma.reshape(1, -1)
            + beta.reshape(1, -1))


if __name__ == "__main__":
    key = jax.random.PRNGKey(0)
    kx, km, ks, kw, kb, kx2 = jax.random.split(key, 6)

    d_in, d_model = 32, 64

    # InputNorm running statistics (count > 1 so normalization is active).
    count = 100.0
    mean = 0.1 * jax.random.normal(km, (1, d_in), dtype=jnp.float32)
    squares_sum = jnp.abs(jax.random.normal(ks, (1, d_in), jnp.float32)) * count + 1.0
    stddev = jnp.sqrt(squares_sum / (count - 1.0))
    stddev = jnp.where(stddev == 0, 1.0, stddev)
    invstd = 1.0 / stddev

    # nn.Linear(d_in, d_model) parameters (deterministic synthetic init).
    bound = 1.0 / jnp.sqrt(jnp.float32(d_in))
    w = jax.random.uniform(kw, (d_in, d_model), jnp.float32, -bound, bound)
    b = jax.random.uniform(kb, (1, d_model), jnp.float32, -bound, bound)

    # LayerNorm(d_model) affine parameters (default init: ones / zeros).
    gamma = jnp.ones((1, d_model), jnp.float32)
    beta = jnp.zeros((1, d_model), jnp.float32)

    # --- check 1: small shape typical of the module (single grid step) ---
    B, S = 2, 8
    x = jax.random.normal(kx, (B, S, d_in), dtype=jnp.float32)
    out = jax.block_until_ready(
        input_embedding(x, mean, invstd, w, b, gamma, beta))
    ref = _reference(x.reshape(-1, d_in), mean, invstd, w, b, gamma, beta)
    assert out.shape == (B, S, d_model)
    assert jnp.allclose(out.reshape(-1, d_model), ref, atol=1e-4, rtol=1e-4)

    # --- check 2: N not a multiple of the tile; multi-step parallel grid ---
    B2, S2 = 2, 1300              # N = 2600 -> padded to 3072 at tm=512
    x_big = jax.random.normal(kx2, (B2, S2, d_in), dtype=jnp.float32)
    out_big = jax.block_until_ready(
        input_embedding(x_big, mean, invstd, w, b, gamma, beta, tm=512))
    ref_big = _reference(x_big.reshape(-1, d_in), mean, invstd, w, b, gamma,
                         beta)
    assert out_big.shape == (B2, S2, d_model)
    assert jnp.allclose(out_big.reshape(-1, d_model), ref_big,
                        atol=1e-4, rtol=1e-4)

    print("KERNEL_OK")
</pallas_src>

<mosaic_0001>
module attributes {stable_mosaic.version = 11 : i64} {
  func.func @kernel(%arg0: i32, %arg1: memref<8x64xf32, #tpu.memory_space<vmem>>, %arg2: memref<1x64xf32, #tpu.memory_space<vmem>>, %arg3: memref<1x64xf32, #tpu.memory_space<vmem>>, %arg4: memref<64x128xf32, #tpu.memory_space<vmem>>, %arg5: memref<1x128xf32, #tpu.memory_space<vmem>>, %arg6: memref<1x128xf32, #tpu.memory_space<vmem>>, %arg7: memref<1x128xf32, #tpu.memory_space<vmem>>, %arg8: memref<128x128xf32, #tpu.memory_space<vmem>>, %arg9: memref<8x128xf32, #tpu.memory_space<vmem>>) attributes {dimension_semantics = [#tpu.dimension_semantics<parallel>], iteration_bounds = array<i64: 1>, scalar_prefetch = 0 : i64, scratch_operands = 0 : i64, tpu.core_type = #tpu.core_type<tc>, window_params = [{transform_indices = @transform_0, window_bounds = array<i64: 8, 64>}, {pipeline_mode = #tpu.pipeline_mode<synchronous>, transform_indices = @transform_1, window_bounds = array<i64: 1, 64>}, {pipeline_mode = #tpu.pipeline_mode<synchronous>, transform_indices = @transform_2, window_bounds = array<i64: 1, 64>}, {pipeline_mode = #tpu.pipeline_mode<synchronous>, transform_indices = @transform_3, window_bounds = array<i64: 64, 128>}, {pipeline_mode = #tpu.pipeline_mode<synchronous>, transform_indices = @transform_4, window_bounds = array<i64: 1, 128>}, {pipeline_mode = #tpu.pipeline_mode<synchronous>, transform_indices = @transform_5, window_bounds = array<i64: 1, 128>}, {pipeline_mode = #tpu.pipeline_mode<synchronous>, transform_indices = @transform_6, window_bounds = array<i64: 1, 128>}, {pipeline_mode = #tpu.pipeline_mode<synchronous>, transform_indices = @transform_7, window_bounds = array<i64: 128, 128>}, {transform_indices = @transform_8, window_bounds = array<i64: 8, 128>}]} {
    %c0 = arith.constant 0 : index
    %c0_0 = arith.constant 0 : index
    %0 = vector.load %arg8[%c0, %c0_0] : memref<128x128xf32, #tpu.memory_space<vmem>>, vector<128x128xf32>
    %c0_1 = arith.constant 0 : index
    %c0_2 = arith.constant 0 : index
    %1 = vector.load %arg1[%c0_1, %c0_2] : memref<8x64xf32, #tpu.memory_space<vmem>>, vector<8x64xf32>
    %c0_3 = arith.constant 0 : index
    %c0_4 = arith.constant 0 : index
    %2 = vector.load %arg2[%c0_3, %c0_4] : memref<1x64xf32, #tpu.memory_space<vmem>>, vector<1x64xf32>
    %3 = vector.broadcast %2 : vector<1x64xf32> to vector<8x64xf32>
    %4 = arith.subf %1, %3 : vector<8x64xf32>
    %c0_5 = arith.constant 0 : index
    %c0_6 = arith.constant 0 : index
    %5 = vector.load %arg3[%c0_5, %c0_6] : memref<1x64xf32, #tpu.memory_space<vmem>>, vector<1x64xf32>
    %6 = vector.broadcast %5 : vector<1x64xf32> to vector<8x64xf32>
    %7 = arith.mulf %4, %6 : vector<8x64xf32>
    %cst = arith.constant -5.000000e+00 : f32
    %cst_7 = arith.constant 5.000000e+00 : f32
    %8 = vector.broadcast %cst : f32 to vector<8x64xf32>
    %9 = arith.maximumf %8, %7 : vector<8x64xf32>
    %10 = vector.broadcast %cst_7 : f32 to vector<8x64xf32>
    %11 = arith.minimumf %10, %9 : vector<8x64xf32>
    %c0_8 = arith.constant 0 : index
    %c0_9 = arith.constant 0 : index
    %12 = vector.load %arg4[%c0_8, %c0_9] : memref<64x128xf32, #tpu.memory_space<vmem>>, vector<64x128xf32>
    %cst_10 = arith.constant dense<0.000000e+00> : vector<8x128xf32>
    %13 = tpu.matmul %11, %12, %cst_10 {dimension_numbers = #tpu.dot_dimension_numbers<[1], [0], [0], [1], [0, 0, 1, 1], [], []>} : vector<8x64xf32>, vector<64x128xf32>, vector<8x128xf32> -> vector<8x128xf32>
    %c0_11 = arith.constant 0 : index
    %c0_12 = arith.constant 0 : index
    %14 = vector.load %arg5[%c0_11, %c0_12] : memref<1x128xf32, #tpu.memory_space<vmem>>, vector<1x128xf32>
    %15 = vector.broadcast %14 : vector<1x128xf32> to vector<8x128xf32>
    %16 = arith.addf %13, %15 : vector<8x128xf32>
    %cst_13 = arith.constant 0.000000e+00 : f32
    %17 = vector.broadcast %cst_13 : f32 to vector<8x128xf32>
    %18 = arith.maximumf %16, %17 : vector<8x128xf32>
    %cst_14 = arith.constant dense<0.000000e+00> : vector<8x128xf32>
    %19 = tpu.matmul %18, %0, %cst_14 {dimension_numbers = #tpu.dot_dimension_numbers<[1], [0], [0], [1], [0, 0, 1, 1], [], []>} : vector<8x128xf32>, vector<128x128xf32>, vector<8x128xf32> -> vector<8x128xf32>
    %20 = arith.mulf %18, %18 : vector<8x128xf32>
    %cst_15 = arith.constant dense<0.000000e+00> : vector<8x128xf32>
    %21 = tpu.matmul %20, %0, %cst_15 {dimension_numbers = #tpu.dot_dimension_numbers<[1], [0], [0], [1], [0, 0, 1, 1], [], []>} : vector<8x128xf32>, vector<128x128xf32>, vector<8x128xf32> -> vector<8x128xf32>
    %22 = arith.mulf %19, %19 : vector<8x128xf32>
    %23 = arith.subf %21, %22 : vector<8x128xf32>
    %24 = arith.subf %18, %19 : vector<8x128xf32>
    %cst_16 = arith.constant 9.99999974E-6 : f32
    %25 = vector.broadcast %cst_16 : f32 to vector<8x128xf32>
    %26 = arith.addf %23, %25 : vector<8x128xf32>
    %27 = math.rsqrt %26 : vector<8x128xf32>
    %28 = arith.mulf %24, %27 : vector<8x128xf32>
    %c0_17 = arith.constant 0 : index
    %c0_18 = arith.constant 0 : index
    %29 = vector.load %arg6[%c0_17, %c0_18] : memref<1x128xf32, #tpu.memory_space<vmem>>, vector<1x128xf32>
    %30 = vector.broadcast %29 : vector<1x128xf32> to vector<8x128xf32>
    %31 = arith.mulf %28, %30 : vector<8x128xf32>
    %c0_19 = arith.constant 0 : index
    %c0_20 = arith.constant 0 : index
    %32 = vector.load %arg7[%c0_19, %c0_20] : memref<1x128xf32, #tpu.memory_space<vmem>>, vector<1x128xf32>
    %33 = vector.broadcast %32 : vector<1x128xf32> to vector<8x128xf32>
    %34 = arith.addf %31, %33 : vector<8x128xf32>
    %c0_21 = arith.constant 0 : index
    %c0_22 = arith.constant 0 : index
    %35 = vector.load %arg9[%c0_21, %c0_22] : memref<8x128xf32, #tpu.memory_space<vmem>>, vector<8x128xf32>
    tpu.vector_store %arg9[%c0_21, %c0_22], %34 {strides = array<i32>} : memref<8x128xf32, #tpu.memory_space<vmem>>, vector<8x128xf32>,
    return
  }
  func.func @transform_0(%arg0: i32) -> (i32, i32) {
    %c0_i32 = arith.constant 0 : i32
    %c0_i32_0 = arith.constant 0 : i32
    return %arg0, %c0_i32 : i32, i32
  }
  func.func @transform_1(%arg0: i32) -> (i32, i32) {
    %c0_i32 = arith.constant 0 : i32
    %c0_i32_0 = arith.constant 0 : i32
    %c0_i32_1 = arith.constant 0 : i32
    return %c0_i32, %c0_i32_0 : i32, i32
  }
  func.func @transform_2(%arg0: i32) -> (i32, i32) {
    %c0_i32 = arith.constant 0 : i32
    %c0_i32_0 = arith.constant 0 : i32
    %c0_i32_1 = arith.constant 0 : i32
    return %c0_i32, %c0_i32_0 : i32, i32
  }
  func.func @transform_3(%arg0: i32) -> (i32, i32) {
    %c0_i32 = arith.constant 0 : i32
    %c0_i32_0 = arith.constant 0 : i32
    %c0_i32_1 = arith.constant 0 : i32
    return %c0_i32, %c0_i32_0 : i32, i32
  }
  func.func @transform_4(%arg0: i32) -> (i32, i32) {
    %c0_i32 = arith.constant 0 : i32
    %c0_i32_0 = arith.constant 0 : i32
    %c0_i32_1 = arith.constant 0 : i32
    return %c0_i32, %c0_i32_0 : i32, i32
  }
  func.func @transform_5(%arg0: i32) -> (i32, i32) {
    %c0_i32 = arith.constant 0 : i32
    %c0_i32_0 = arith.constant 0 : i32
    %c0_i32_1 = arith.constant 0 : i32
    return %c0_i32, %c0_i32_0 : i32, i32
  }
  func.func @transform_6(%arg0: i32) -> (i32, i32) {
    %c0_i32 = arith.constant 0 : i32
    %c0_i32_0 = arith.constant 0 : i32
    %c0_i32_1 = arith.constant 0 : i32
    return %c0_i32, %c0_i32_0 : i32, i32
  }
  func.func @transform_7(%arg0: i32) -> (i32, i32) {
    %c0_i32 = arith.constant 0 : i32
    %c0_i32_0 = arith.constant 0 : i32
    %c0_i32_1 = arith.constant 0 : i32
    return %c0_i32, %c0_i32_0 : i32, i32
  }
  func.func @transform_8(%arg0: i32) -> (i32, i32) {
    %c0_i32 = arith.constant 0 : i32
    %c0_i32_0 = arith.constant 0 : i32
    return %arg0, %c0_i32 : i32, i32
  }
}

</mosaic_0001>

<llo_original>
// kernel: input_embedding.1
$region0: #{input_embedding.1}
  #allocation0 [shape = 'u32[]', space=smem, size = 0x4, offset = 0x4, fixed_abs, tag = 'smem constant byte address 0x4 - core index']
  #allocation1 [shape = 'u32[144,128]{1,0:T(1,128)}', space=vmem, size = 0x12000, scoped, tag = 'internal scratch']
  %s0 = inlined_call_operand.vmem [shape: f32[8,64], index: 0, kind: input, shape index: {}]
  %s1 = inlined_call_operand.vmem [shape: f32[1,64], index: 1, kind: input, shape index: {}]
  %s2 = inlined_call_operand.vmem [shape: f32[1,64], index: 2, kind: input, shape index: {}]
  %s3 = inlined_call_operand.vmem [shape: f32[64,128], index: 3, kind: input, shape index: {}]
  %s4 = inlined_call_operand.vmem [shape: f32[1,128], index: 4, kind: input, shape index: {}]
  %s5 = inlined_call_operand.vmem [shape: f32[1,128], index: 5, kind: input, shape index: {}]
  %s6 = inlined_call_operand.vmem [shape: f32[1,128], index: 6, kind: input, shape index: {}]
  %s7 = inlined_call_operand.vmem [shape: f32[128,128], index: 7, kind: input, shape index: {}]
  %s8 = inlined_call_operand.vmem [shape: f32[8,128], index: 8, kind: output, shape index: {}]
  %s9 = sld [smem:[#allocation0]]
  $region42: #{input_embedding.1} parent=0
    _
  %s11 = ssub.s32 1, %s9
  %s12 = scalar_select 0, %s11, %s9
  // Predicated region
  $region2: #{input_embedding.1} parent=0 // pred_check
    _
  $region3: #{input_embedding.1} parent=0 // pred_check_branch
    %14 = sbr.rel (0) target = $region5
  $region4: #{input_embedding.1} parent=0 // pred_region
    _
  $region5: #{input_embedding.1} parent=0 // pred_fallthru
    _
  // Predicated region
  $region6: #{input_embedding.1} parent=0 // pred_check
    _
  $region7: #{input_embedding.1} parent=0 // pred_check_branch
    %16 = sbr.rel (0) target = $region9
  $region8: #{input_embedding.1} parent=0 // pred_region
    _
  $region9: #{input_embedding.1} parent=0 // pred_fallthru
    _
  // Predicated region
  $region10: #{input_embedding.1} parent=0 // pred_check
    _
  $region11: #{input_embedding.1} parent=0 // pred_check_branch
    %18 = sbr.rel (0) target = $region13
  $region12: #{input_embedding.1} parent=0 // pred_region
    _
  $region13: #{input_embedding.1} parent=0 // pred_fallthru
    _
  // Predicated region
  $region14: #{input_embedding.1} parent=0 // pred_check
    _
  $region15: #{input_embedding.1} parent=0 // pred_check_branch
    %20 = sbr.rel (0) target = $region17
  $region16: #{input_embedding.1} parent=0 // pred_region
    _
  $region17: #{input_embedding.1} parent=0 // pred_fallthru
    _
  // Predicated region
  $region18: #{input_embedding.1} parent=0 // pred_check
    _
  $region19: #{input_embedding.1} parent=0 // pred_check_branch
    %22 = sbr.rel (0) target = $region21
  $region20: #{input_embedding.1} parent=0 // pred_region
    _
  $region21: #{input_embedding.1} parent=0 // pred_fallthru
    _
  // Predicated region
  $region22: #{input_embedding.1} parent=0 // pred_check
    _
  $region23: #{input_embedding.1} parent=0 // pred_check_branch
    %24 = sbr.rel (0) target = $region25
  $region24: #{input_embedding.1} parent=0 // pred_region
    _
  $region25: #{input_embedding.1} parent=0 // pred_fallthru
    _
  // Predicated region
  $region26: #{input_embedding.1} parent=0 // pred_check
    _
  $region27: #{input_embedding.1} parent=0 // pred_check_branch
    %26 = sbr.rel (0) target = $region29
  $region28: #{input_embedding.1} parent=0 // pred_region
    _
  $region29: #{input_embedding.1} parent=0 // pred_fallthru
    _
  // Predicated region
  $region30: #{input_embedding.1} parent=0 // pred_check
    _
  $region31: #{input_embedding.1} parent=0 // pred_check_branch
    %28 = sbr.rel (0) target = $region33
  $region32: #{input_embedding.1} parent=0 // pred_region
    _
  $region33: #{input_embedding.1} parent=0 // pred_fallthru
    _
  %v29 = vld [vmem:[%s7] sm:$0xff]
  %v30 = vld [vmem:[%s7 + $0x8] sm:$0xff]
  %v31 = vld [vmem:[%s7 + $0x10] sm:$0xff]
  %v32 = vld [vmem:[%s7 + $0x18] sm:$0xff]
  %v33 = vld [vmem:[%s7 + $0x20] sm:$0xff]
  %v34 = vld [vmem:[%s7 + $0x28] sm:$0xff]
  %v35 = vld [vmem:[%s7 + $0x30] sm:$0xff]
  %v36 = vld [vmem:[%s7 + $0x38] sm:$0xff]
  %v37 = vld [vmem:[%s7 + $0x40] sm:$0xff]
  %v38 = vld [vmem:[%s7 + $0x48] sm:$0xff]
  %v39 = vld [vmem:[%s7 + $0x50] sm:$0xff]
  %v40 = vld [vmem:[%s7 + $0x58] sm:$0xff]
  %v41 = vld [vmem:[%s7 + $0x60] sm:$0xff]
  %v42 = vld [vmem:[%s7 + $0x68] sm:$0xff]
  %v43 = vld [vmem:[%s7 + $0x70] sm:$0xff]
  %v44 = vld [vmem:[%s7 + $0x78] sm:$0xff]
  %v45 = vld [vmem:[%s0] sm:$0xff]
  %v46 = vld [vmem:[%s1] sm:$0x1]
  %v48 = vlaneseq
  %v49 = vshrl.u32 %v48, 7
  %v50 = vsub.s32 0, %v49
  %v51 = vrot.slane %v46, %v50
  %v53 = vsub.f32 %v45, %v51
  %v54 = vld [vmem:[%s2] sm:$0x1]
  %v56 = vlaneseq
  %v57 = vshrl.u32 %v56, 7
  %v58 = vsub.s32 0, %v57
  %v59 = vrot.slane %v54, %v58
  %v61 = vmul.f32 %v53, %v59
  %v62 = vmax.f32 %v61, -5.0
  %v63 = vmin.f32 %v62, 5.0
  %v64 = vld [vmem:[%s3] sm:$0xff]
  %v65 = vld [vmem:[%s3 + $0x8] sm:$0xff]
  %v66 = vld [vmem:[%s3 + $0x10] sm:$0xff]
  %v67 = vld [vmem:[%s3 + $0x18] sm:$0xff]
  %v68 = vld [vmem:[%s3 + $0x20] sm:$0xff]
  %v69 = vld [vmem:[%s3 + $0x28] sm:$0xff]
  %v70 = vld [vmem:[%s3 + $0x30] sm:$0xff]
  %v71 = vld [vmem:[%s3 + $0x38] sm:$0xff]
  %v72 = vld [vmem:[%s4] sm:$0x1]
  %v74 = vlaneseq
  %v75 = vshrl.u32 %v74, 7
  %v76 = vsub.s32 0, %v75
  %v77 = vrot.slane %v72, %v76
  %vm79 = vcmask 523264
  %v81 = vsel %vm79, %v63, 0
  %83 = vmatprep.subr.mxu0 0.0
  %84 = vmatpush1.msra.mxu0 %v64
  %85 = vmatprep.subr.mxu0 0.0
  %86 = vmatpush1.msra.mxu0 %v65
  %87 = vmatprep.subr.mxu0 0.0
  %88 = vmatpush1.msra.mxu0 %v66
  %89 = vmatprep.subr.mxu0 0.0
  %90 = vmatpush1.msra.mxu0 %v67
  %91 = vmatprep.subr.mxu0 0.0
  %92 = vmatpush1.msra.mxu0 %v68
  %93 = vmatprep.subr.mxu0 0.0
  %94 = vmatpush1.msra.mxu0 %v69
  %95 = vmatprep.subr.mxu0 0.0
  %96 = vmatpush1.msra.mxu0 %v70
  %97 = vmatprep.subr.mxu0 0.0
  %98 = vmatpush1.msra.mxu0 %v71
  %99 = vmatprep.subr.mxu0 0.0
  %100 = vmatpush1.msra.mxu0 0.0
  %101 = vmatprep.subr.mxu0 0.0
  %102 = vmatpush1.msra.mxu0 0.0
  %103 = vmatprep.subr.mxu0 0.0
  %104 = vmatpush1.msra.mxu0 0.0
  %105 = vmatprep.subr.mxu0 0.0
  %106 = vmatpush1.msra.mxu0 0.0
  %107 = vmatprep.subr.mxu0 0.0
  %108 = vmatpush1.msra.mxu0 0.0
  %109 = vmatprep.subr.mxu0 0.0
  %110 = vmatpush1.msra.mxu0 0.0
  %111 = vmatprep.subr.mxu0 0.0
  %112 = vmatpush1.msra.mxu0 0.0
  %113 = vmatprep.subr.mxu0 0.0
  %114 = vmatpush1.msra.mxu0 0.0
  %115 = vmatprep.subr.mxu0 0.0
  %116 = vmatpush1.msra.mxu0 0.0
  %117 = vmatprep.subr.mxu0 0.0
  %118 = vmatpush1.msra.mxu0 0.0
  %119 = vmatprep.subr.mxu0 0.0
  %120 = vmatpush1.msra.mxu0 0.0
  %121 = vmatprep.subr.mxu0 0.0
  %122 = vmatpush1.msra.mxu0 0.0
  %123 = vmatprep.subr.mxu0 0.0
  %124 = vmatpush1.msra.mxu0 0.0
  %125 = vmatprep.subr.mxu0 0.0
  %126 = vmatpush1.msra.mxu0 0.0
  %127 = vmatprep.subr.mxu0 0.0
  %128 = vmatpush1.msra.mxu0 0.0
  %129 = vmatprep.subr.mxu0 0.0
  %130 = vmatpush1.msra.mxu0 0.0
  %131 = vmatprep.subr.mxu0 0.0
  %132 = vmatpush1.msra.mxu0 0.0
  %133 = vmatprep.subr.mxu0 0.0
  %134 = vmatpush1.msra.mxu0 0.0
  %135 = vmatprep.subr.mxu0 0.0
  %136 = vmatpush1.msra.mxu0 0.0
  %137 = vmatprep.subr.mxu0 0.0
  %138 = vmatpush1.msra.mxu0 0.0
  %139 = vmatprep.subr.mxu0 0.0
  %140 = vmatpush1.msra.mxu0 0.0
  %141 = vmatprep.subr.mxu0 0.0
  %142 = vmatpush1.msra.mxu0 0.0
  %143 = vmatprep.subr.mxu0 0.0
  %144 = vmatpush1.msra.mxu0 0.0
  %145 = vmatprep.subr.mxu0 0.0
  %146 = vmatpush1.msra.mxu0 0.0
  %147 = vmatprep.mubr.f32.mxu0 0.0
  %148 = vmatmul.mubr.f32.gmra.mrb[0].mxu0 %v81
  %v149 = vpop.f32.mrb[0].mxu0
  %v150 = vadd.f32 %v77, %v149
  %v151 = vpop.f32.mrb[0].mxu0
  %152 = vdwg.mxu0
  %v153 = vmax.f32 %v150, 0.0
  %154 = vmatprep.subr.mxu0 0.0
  %155 = vmatpush1.msra.mxu0 %v29
  %156 = vmatprep.subr.mxu0 0.0
  %157 = vmatpush1.msra.mxu0 %v30
  %158 = vmatprep.subr.mxu0 0.0
  %159 = vmatpush1.msra.mxu0 %v31
  %160 = vmatprep.subr.mxu0 0.0
  %161 = vmatpush1.msra.mxu0 %v32
  %162 = vmatprep.subr.mxu0 0.0
  %163 = vmatpush1.msra.mxu0 %v33
  %164 = vmatprep.subr.mxu0 0.0
  %165 = vmatpush1.msra.mxu0 %v34
  %166 = vmatprep.subr.mxu0 0.0
  %167 = vmatpush1.msra.mxu0 %v35
  %168 = vmatprep.subr.mxu0 0.0
  %169 = vmatpush1.msra.mxu0 %v36
  %170 = vmatprep.subr.mxu0 0.0
  %171 = vmatpush1.msra.mxu0 %v37
  %172 = vmatprep.subr.mxu0 0.0
  %173 = vmatpush1.msra.mxu0 %v38
  %174 = vmatprep.subr.mxu0 0.0
  %175 = vmatpush1.msra.mxu0 %v39
  %176 = vmatprep.subr.mxu0 0.0
  %177 = vmatpush1.msra.mxu0 %v40
  %178 = vmatprep.subr.mxu0 0.0
  %179 = vmatpush1.msra.mxu0 %v41
  %180 = vmatprep.subr.mxu0 0.0
  %181 = vmatpush1.msra.mxu0 %v42
  %182 = vmatprep.subr.mxu0 0.0
  %183 = vmatpush1.msra.mxu0 %v43
  %184 = vmatprep.subr.mxu0 0.0
  %185 = vmatpush1.msra.mxu0 %v44
  %186 = vmatprep.subr.mxu0 0.0
  %187 = vmatpush1.msra.mxu0 0.0
  %188 = vmatprep.subr.mxu0 0.0
  %189 = vmatpush1.msra.mxu0 0.0
  %190 = vmatprep.subr.mxu0 0.0
  %191 = vmatpush1.msra.mxu0 0.0
  %192 = vmatprep.subr.mxu0 0.0
  %193 = vmatpush1.msra.mxu0 0.0
  %194 = vmatprep.subr.mxu0 0.0
  %195 = vmatpush1.msra.mxu0 0.0
  %196 = vmatprep.subr.mxu0 0.0
  %197 = vmatpush1.msra.mxu0 0.0
  %198 = vmatprep.subr.mxu0 0.0
  %199 = vmatpush1.msra.mxu0 0.0
  %200 = vmatprep.subr.mxu0 0.0
  %201 = vmatpush1.msra.mxu0 0.0
  %202 = vmatprep.subr.mxu0 0.0
  %203 = vmatpush1.msra.mxu0 0.0
  %204 = vmatprep.subr.mxu0 0.0
  %205 = vmatpush1.msra.mxu0 0.0
  %206 = vmatprep.subr.mxu0 0.0
  %207 = vmatpush1.msra.mxu0 0.0
  %208 = vmatprep.subr.mxu0 0.0
  %209 = vmatpush1.msra.mxu0 0.0
  %210 = vmatprep.subr.mxu0 0.0
  %211 = vmatpush1.msra.mxu0 0.0
  %212 = vmatprep.subr.mxu0 0.0
  %213 = vmatpush1.msra.mxu0 0.0
  %214 = vmatprep.subr.mxu0 0.0
  %215 = vmatpush1.msra.mxu0 0.0
  %216 = vmatprep.subr.mxu0 0.0
  %217 = vmatpush1.msra.mxu0 0.0
  %218 = vmatprep.mubr.f32.mxu0 0.0
  %219 = vmatmul.mubr.f32.gmra.mrb[0].mxu0 %v153
  %v220 = vpop.f32.mrb[0].mxu0
  %v221 = vadd.f32 0.0, %v220
  %v222 = vpop.f32.mrb[0].mxu0
  %223 = vdwg.mxu0
  %v224 = vmul.f32 %v153, %v153
  %225 = vmatprep.subr.mxu0 0.0
  %226 = vmatpush1.msra.mxu0 %v29
  %227 = vmatprep.subr.mxu0 0.0
  %228 = vmatpush1.msra.mxu0 %v30
  %229 = vmatprep.subr.mxu0 0.0
  %230 = vmatpush1.msra.mxu0 %v31
  %231 = vmatprep.subr.mxu0 0.0
  %232 = vmatpush1.msra.mxu0 %v32
  %233 = vmatprep.subr.mxu0 0.0
  %234 = vmatpush1.msra.mxu0 %v33
  %235 = vmatprep.subr.mxu0 0.0
  %236 = vmatpush1.msra.mxu0 %v34
  %237 = vmatprep.subr.mxu0 0.0
  %238 = vmatpush1.msra.mxu0 %v35
  %239 = vmatprep.subr.mxu0 0.0
  %240 = vmatpush1.msra.mxu0 %v36
  %241 = vmatprep.subr.mxu0 0.0
  %242 = vmatpush1.msra.mxu0 %v37
  %243 = vmatprep.subr.mxu0 0.0
  %244 = vmatpush1.msra.mxu0 %v38
  %245 = vmatprep.subr.mxu0 0.0
  %246 = vmatpush1.msra.mxu0 %v39
  %247 = vmatprep.subr.mxu0 0.0
  %248 = vmatpush1.msra.mxu0 %v40
  %249 = vmatprep.subr.mxu0 0.0
  %250 = vmatpush1.msra.mxu0 %v41
  %251 = vmatprep.subr.mxu0 0.0
  %252 = vmatpush1.msra.mxu0 %v42
  %253 = vmatprep.subr.mxu0 0.0
  %254 = vmatpush1.msra.mxu0 %v43
  %255 = vmatprep.subr.mxu0 0.0
  %256 = vmatpush1.msra.mxu0 %v44
  %257 = vmatprep.subr.mxu0 0.0
  %258 = vmatpush1.msra.mxu0 0.0
  %259 = vmatprep.subr.mxu0 0.0
  %260 = vmatpush1.msra.mxu0 0.0
  %261 = vmatprep.subr.mxu0 0.0
  %262 = vmatpush1.msra.mxu0 0.0
  %263 = vmatprep.subr.mxu0 0.0
  %264 = vmatpush1.msra.mxu0 0.0
  %265 = vmatprep.subr.mxu0 0.0
  %266 = vmatpush1.msra.mxu0 0.0
  %267 = vmatprep.subr.mxu0 0.0
  %268 = vmatpush1.msra.mxu0 0.0
  %269 = vmatprep.subr.mxu0 0.0
  %270 = vmatpush1.msra.mxu0 0.0
  %271 = vmatprep.subr.mxu0 0.0
  %272 = vmatpush1.msra.mxu0 0.0
  %273 = vmatprep.subr.mxu0 0.0
  %274 = vmatpush1.msra.mxu0 0.0
  %275 = vmatprep.subr.mxu0 0.0
  %276 = vmatpush1.msra.mxu0 0.0
  %277 = vmatprep.subr.mxu0 0.0
  %278 = vmatpush1.msra.mxu0 0.0
  %279 = vmatprep.subr.mxu0 0.0
  %280 = vmatpush1.msra.mxu0 0.0
  %281 = vmatprep.subr.mxu0 0.0
  %282 = vmatpush1.msra.mxu0 0.0
  %283 = vmatprep.subr.mxu0 0.0
  %284 = vmatpush1.msra.mxu0 0.0
  %285 = vmatprep.subr.mxu0 0.0
  %286 = vmatpush1.msra.mxu0 0.0
  %287 = vmatprep.subr.mxu0 0.0
  %288 = vmatpush1.msra.mxu0 0.0
  %289 = vmatprep.mubr.f32.mxu0 0.0
  %290 = vmatmul.mubr.f32.gmra.mrb[0].mxu0 %v224
  %v291 = vpop.f32.mrb[0].mxu0
  %v292 = vadd.f32 0.0, %v291
  %v293 = vpop.f32.mrb[0].mxu0
  %294 = vdwg.mxu0
  %v295 = vmul.f32 %v221, %v221
  %v296 = vsub.f32 %v292, %v295
  %v297 = vsub.f32 %v153, %v221
  %v298 = vadd.f32 %v296, 1e-05
  %v299 = vrsqrt.pop %v298
  %v300 = vmul.f32 %v297, %v299
  %v301 = vld [vmem:[%s5] sm:$0x1]
  %v303 = vlaneseq
  %v304 = vshrl.u32 %v303, 7
  %v305 = vsub.s32 0, %v304
  %v306 = vrot.slane %v301, %v305
  %v308 = vmul.f32 %v300, %v306
  %v309 = vld [vmem:[%s6] sm:$0x1]
  %v311 = vlaneseq
  %v312 = vshrl.u32 %v311, 7
  %v313 = vsub.s32 0, %v312
  %v314 = vrot.slane %v309, %v313
  %v316 = vadd.f32 %v308, %v314
  %317 = vst [vmem:[%s8] sm:$0xff] %v316
  // Predicated region
  $region34: #{input_embedding.1} parent=0 // pred_check
    _
  $region35: #{input_embedding.1} parent=0 // pred_check_branch
    %319 = sbr.rel (0) target = $region37
  $region36: #{input_embedding.1} parent=0 // pred_region
    _
  $region37: #{input_embedding.1} parent=0 // pred_fallthru
    _
  // Predicated region
  $region38: #{input_embedding.1} parent=0 // pred_check
    _
  $region39: #{input_embedding.1} parent=0 // pred_check_branch
    %321 = sbr.rel (0) target = $region41
  $region40: #{input_embedding.1} parent=0 // pred_region
    _
  $region41: #{input_embedding.1} parent=0 // pred_fallthru
    _

</llo_original>
